<compile_context>
chip_gen: v5e
topology: v5e:2x2
jax: 0.10.0
libtpu: 0.0.40
codegen_flags: <defaults>
</compile_context>

<pallas_src>
import functools

import jax
import jax.numpy as jnp
from jax.experimental import pallas as pl
from jax.experimental.pallas import tpu as pltpu

KERNEL_SIZE = 3   # conv taps, padding=1 ("same")
LANE = 128        # TPU lane width


def residual_conv1d_kernel(x_ref, w_ref, b_ref, o_ref, *, seq_len):
    """One batch-aligned row tile per grid step.

    x_ref: (TM, CP)    activations, rows = flattened (batch, position), f32
    w_ref: (3*CP, CP)  stacked conv taps [w_prev; w_curr; w_next], bf16
    b_ref: (1, CP)     bias, f32
    o_ref: (TM, CP)    conv1d(x) + bias + x, f32
    """
    x = x_ref[...]                                       # (TM, CP) f32
    tm = x.shape[0]

    # Position within a sequence; tiles are batch-aligned so row % L == l.
    l_idx = jax.lax.broadcasted_iota(jnp.int32, (tm, 1), 0) % seq_len

    # Neighbour rows via XLU roll (free slot next to MXU/VPU work).
    # pltpu.roll requires non-negative shifts, so "shift by -1" is expressed as
    # "shift by tm - 1"; the wrapped-around rows land exactly where the
    # per-sequence boundary masks zero them out (l == 0 / l == L - 1), so the
    # result is identical to zero-padded 'same' convolution and no activation
    # leaks across batch seams inside the tile.
    x_prev = jnp.where(l_idx == 0, 0.0,
                       pltpu.roll(x, shift=1, axis=0))
    x_next = jnp.where(l_idx == seq_len - 1, 0.0,
                       pltpu.roll(x, shift=tm - 1, axis=0))

    # im2col along lanes -> one deep (K = 3*CP) MXU matmul, bf16 in, f32 acc.
    xc = jnp.concatenate([x_prev, x, x_next], axis=1).astype(jnp.bfloat16)
    y = jnp.dot(xc, w_ref[...], preferred_element_type=jnp.float32)

    # f32 epilogue: bias + residual.  CP = 128 lanes -> unmasked stores.
    o_ref[...] = y + b_ref[...] + x


def residual_conv1d(x_ncl, w_kio, b, *, max_rows_per_step=1024):
    """x_ncl: (N, C, L) float32 (PyTorch NCL layout). Returns (N, C, L)."""
    N, C, L = x_ncl.shape
    CP = ((C + LANE - 1) // LANE) * LANE          # channels padded to lane width
    R = N * L

    # NCL -> rows-major channels-last (R, C); zero-pad channels to CP lanes so
    # the kernel's stores / matmuls are lane-dense.
    x_rows = jnp.transpose(x_ncl, (0, 2, 1)).reshape(R, C)
    x_rows = jnp.pad(x_rows, ((0, 0), (0, CP - C)))

    # Stack the 3 taps into one (3*CP, CP) weight; tap k multiplies x[l + k - 1].
    w_pad = jnp.pad(w_kio, ((0, 0), (0, CP - C), (0, CP - C)))   # (3, CP, CP)
    w_big = w_pad.reshape(KERNEL_SIZE * CP, CP).astype(jnp.bfloat16)
    b_pad = jnp.pad(b, (0, CP - C)).reshape(1, CP).astype(jnp.float32)

    # Batch-aligned row tiles: NB whole sequences per grid step (no halo needed;
    # batch seams are handled by the in-kernel masks).
    candidates = [nb for nb in range(1, N + 1)
                  if N % nb == 0 and nb * L <= max_rows_per_step
                  and (nb * L) % 8 == 0]
    NB = max(candidates) if candidates else N
    TM = NB * L
    grid = (N // NB,)
    # TODO(synk): for very long sequences, additionally tile L with a 1-row halo.

    kernel = functools.partial(residual_conv1d_kernel, seq_len=L)
    out_rows = pl.pallas_call(
        kernel,
        out_shape=jax.ShapeDtypeStruct((R, CP), jnp.float32),
        grid_spec=pltpu.PrefetchScalarGridSpec(
            num_scalar_prefetch=0,
            grid=grid,
            in_specs=[
                pl.BlockSpec((TM, CP), lambda i: (i, 0)),
                pl.BlockSpec((KERNEL_SIZE * CP, CP), lambda i: (0, 0)),
                pl.BlockSpec((1, CP), lambda i: (0, 0)),
            ],
            out_specs=pl.BlockSpec((TM, CP), lambda i: (i, 0)),
        ),
        compiler_params=pltpu.CompilerParams(
            dimension_semantics=("parallel",)),
    )(x_rows, w_big, b_pad)

    out_nlc = out_rows[:, :C].reshape(N, L, C)
    return jnp.transpose(out_nlc, (0, 2, 1))             # back to (N, C, L)


def reference(x_ncl, w_kio, b):
    """Pure-JAX reference: Conv1d(k=3, pad=1; bf16 operands, f32 acc) + bias + x."""
    x_nlc = jnp.transpose(x_ncl, (0, 2, 1))
    N, L, C = x_nlc.shape
    xp = jnp.pad(x_nlc, ((0, 0), (1, 1), (0, 0)))
    y = jnp.zeros((N, L, C), jnp.float32)
    for k in range(KERNEL_SIZE):
        y = y + jnp.einsum(
            'nli,io->nlo',
            xp[:, k:k + L].astype(jnp.bfloat16),
            w_kio[k].astype(jnp.bfloat16),
            preferred_element_type=jnp.float32)
    y = y + b.reshape(1, 1, C) + x_nlc
    return jnp.transpose(y, (0, 2, 1))


if __name__ == "__main__":
    key = jax.random.PRNGKey(0)
    kx, kw, kb = jax.random.split(key, 3)

    N, C, L = 2, 32, 16                        # small NCL shapes, like PyTorch
    x = jax.random.normal(kx, (N, C, L), dtype=jnp.float32)
    # torch Conv1d weight is (C_out, C_in, K); stored here as (K, C_in, C_out).
    w = jax.random.normal(kw, (KERNEL_SIZE, C, C), dtype=jnp.float32) * 0.1
    b = jax.random.normal(kb, (C,), dtype=jnp.float32) * 0.1

    out = residual_conv1d(x, w, b)
    out = jax.block_until_ready(out)

    ref = reference(x, w, b)
    assert out.shape == (N, C, L)
    assert jnp.allclose(out, ref, atol=2e-3, rtol=2e-3), (
        float(jnp.max(jnp.abs(out - ref))))

    print("KERNEL_OK")
</pallas_src>

<mosaic_0001>
module attributes {stable_mosaic.version = 11 : i64} {
  func.func @residual_conv1d_kernel(%arg0: i32, %arg1: memref<32x128xf32, #tpu.memory_space<vmem>>, %arg2: memref<384x128xbf16, #tpu.memory_space<vmem>>, %arg3: memref<1x128xf32, #tpu.memory_space<vmem>>, %arg4: memref<32x128xf32, #tpu.memory_space<vmem>>) attributes {dimension_semantics = [#tpu.dimension_semantics<parallel>], iteration_bounds = array<i64: 1>, scalar_prefetch = 0 : i64, scratch_operands = 0 : i64, tpu.core_type = #tpu.core_type<tc>, window_params = [{transform_indices = @transform_0, window_bounds = array<i64: 32, 128>}, {pipeline_mode = #tpu.pipeline_mode<synchronous>, transform_indices = @transform_1, window_bounds = array<i64: 384, 128>}, {pipeline_mode = #tpu.pipeline_mode<synchronous>, transform_indices = @transform_2, window_bounds = array<i64: 1, 128>}, {transform_indices = @transform_3, window_bounds = array<i64: 32, 128>}]} {
    %c0 = arith.constant 0 : index
    %c0_0 = arith.constant 0 : index
    %0 = vector.load %arg1[%c0, %c0_0] : memref<32x128xf32, #tpu.memory_space<vmem>>, vector<32x128xf32>
    %1 = tpu.iota {dimensions = array<i32: 0>} : vector<32x1xi32>
    %c16_i32 = arith.constant 16 : i32
    %c0_i32 = arith.constant 0 : i32
    %2 = arith.cmpi eq, %c16_i32, %c0_i32 : i32
    %c1_i32 = arith.constant 1 : i32
    %3 = arith.select %2, %c1_i32, %c16_i32 : i32
    %4 = vector.broadcast %3 : i32 to vector<32x1xi32>
    %5 = arith.remsi %1, %4 : vector<32x1xi32>
    %c0_i32_1 = arith.constant 0 : i32
    %6 = vector.broadcast %c0_i32_1 : i32 to vector<32x1xi32>
    %7 = arith.cmpi ne, %5, %6 : vector<32x1xi32>
    %c0_i32_2 = arith.constant 0 : i32
    %8 = vector.broadcast %c0_i32_2 : i32 to vector<32x1xi32>
    %9 = arith.cmpi slt, %5, %8 : vector<32x1xi32>
    %c0_i32_3 = arith.constant 0 : i32
    %10 = arith.cmpi slt, %3, %c0_i32_3 : i32
    %11 = vector.broadcast %10 : i1 to vector<32x1xi1>
    %12 = vector.broadcast %11 : vector<32x1xi1> to vector<32x1xi1>
    %13 = arith.xori %9, %12 : vector<32x1xi1>
    %14 = arith.andi %13, %7 : vector<32x1xi1>
    %15 = vector.broadcast %3 : i32 to vector<32x1xi32>
    %16 = arith.addi %5, %15 : vector<32x1xi32>
    %17 = arith.select %14, %16, %5 : vector<32x1xi1>, vector<32x1xi32>
    %c0_i32_4 = arith.constant 0 : i32
    %18 = vector.broadcast %c0_i32_4 : i32 to vector<32x1xi32>
    %19 = arith.cmpi eq, %17, %18 : vector<32x1xi32>
    %c1_i32_5 = arith.constant 1 : i32
    %20 = tpu.dynamic_rotate %0 by %c1_i32_5 dim 0 : vector<32x128xf32>, i32 -> vector<32x128xf32>
    %cst = arith.constant 0.000000e+00 : f32
    %21 = vector.shape_cast %19 : vector<32x1xi1> to vector<32x1xi1>
    %22 = vector.broadcast %21 : vector<32x1xi1> to vector<32x128xi1>
    %23 = vector.broadcast %cst : f32 to vector<32x128xf32>
    %24 = arith.select %22, %23, %20 : vector<32x128xi1>, vector<32x128xf32>
    %c15_i32 = arith.constant 15 : i32
    %25 = vector.broadcast %c15_i32 : i32 to vector<32x1xi32>
    %26 = arith.cmpi eq, %17, %25 : vector<32x1xi32>
    %c31_i32 = arith.constant 31 : i32
    %27 = tpu.dynamic_rotate %0 by %c31_i32 dim 0 : vector<32x128xf32>, i32 -> vector<32x128xf32>
    %cst_6 = arith.constant 0.000000e+00 : f32
    %28 = vector.shape_cast %26 : vector<32x1xi1> to vector<32x1xi1>
    %29 = vector.broadcast %28 : vector<32x1xi1> to vector<32x128xi1>
    %30 = vector.broadcast %cst_6 : f32 to vector<32x128xf32>
    %31 = arith.select %29, %30, %27 : vector<32x128xi1>, vector<32x128xf32>
    %32 = tpu.concatenate %24, %0, %31 in 1 : vector<32x128xf32>, vector<32x128xf32>, vector<32x128xf32> -> vector<32x384xf32>
    %33 = arith.truncf %32 : vector<32x384xf32> to vector<32x384xbf16>
    %c0_7 = arith.constant 0 : index
    %c0_8 = arith.constant 0 : index
    %34 = vector.load %arg2[%c0_7, %c0_8] : memref<384x128xbf16, #tpu.memory_space<vmem>>, vector<384x128xbf16>
    %cst_9 = arith.constant dense<0.000000e+00> : vector<32x128xf32>
    %35 = tpu.matmul %33, %34, %cst_9 {dimension_numbers = #tpu.dot_dimension_numbers<[1], [0], [0], [1], [0, 0, 1, 1], [], []>} : vector<32x384xbf16>, vector<384x128xbf16>, vector<32x128xf32> -> vector<32x128xf32>
    %c0_10 = arith.constant 0 : index
    %c0_11 = arith.constant 0 : index
    %36 = vector.load %arg3[%c0_10, %c0_11] : memref<1x128xf32, #tpu.memory_space<vmem>>, vector<1x128xf32>
    %37 = vector.broadcast %36 : vector<1x128xf32> to vector<32x128xf32>
    %38 = arith.addf %35, %37 : vector<32x128xf32>
    %39 = arith.addf %38, %0 : vector<32x128xf32>
    %c0_12 = arith.constant 0 : index
    %c0_13 = arith.constant 0 : index
    %40 = vector.load %arg4[%c0_12, %c0_13] : memref<32x128xf32, #tpu.memory_space<vmem>>, vector<32x128xf32>
    tpu.vector_store %arg4[%c0_12, %c0_13], %39 {strides = array<i32>} : memref<32x128xf32, #tpu.memory_space<vmem>>, vector<32x128xf32>,
    return
  }
  func.func @transform_0(%arg0: i32) -> (i32, i32) {
    %c0_i32 = arith.constant 0 : i32
    %c0_i32_0 = arith.constant 0 : i32
    return %arg0, %c0_i32 : i32, i32
  }
  func.func @transform_1(%arg0: i32) -> (i32, i32) {
    %c0_i32 = arith.constant 0 : i32
    %c0_i32_0 = arith.constant 0 : i32
    %c0_i32_1 = arith.constant 0 : i32
    return %c0_i32, %c0_i32_0 : i32, i32
  }
  func.func @transform_2(%arg0: i32) -> (i32, i32) {
    %c0_i32 = arith.constant 0 : i32
    %c0_i32_0 = arith.constant 0 : i32
    %c0_i32_1 = arith.constant 0 : i32
    return %c0_i32, %c0_i32_0 : i32, i32
  }
  func.func @transform_3(%arg0: i32) -> (i32, i32) {
    %c0_i32 = arith.constant 0 : i32
    %c0_i32_0 = arith.constant 0 : i32
    return %arg0, %c0_i32 : i32, i32
  }
}

</mosaic_0001>

<llo_original>
// kernel: tpu_custom_call.1
$region0: #{tpu_custom_call.1}
  #allocation0 [shape = 'u32[]', space=smem, size = 0x4, offset = 0x4, fixed_abs, tag = 'smem constant byte address 0x4 - core index']
  #allocation1 [shape = 'u32[72,128]{1,0:T(1,128)}', space=vmem, size = 0x9000, scoped, tag = 'internal scratch']
  %s0 = inlined_call_operand.hbm [shape: f32[32,128], index: 0, kind: input, shape index: {}]
  %s1 = inlined_call_operand.hbm [shape: bf16[384,128], index: 1, kind: input, shape index: {}]
  %s2 = inlined_call_operand.vmem [shape: f32[1,128], index: 2, kind: input, shape index: {}]
  %s3 = inlined_call_operand.hbm [shape: f32[32,128], index: 3, kind: output, shape index: {}]
  %s4 = sld [smem:[#allocation0]]
  $region30: #{tpu_custom_call.1} parent=0
    _
  %s6 = ssub.s32 1, %s4
  %s7 = scalar_select 0, %s6, %s4
  $region1: #{tpu_custom_call.1} parent=0
    #allocation2 [shape = 'u8[16384]{0}', space=vmem, size = 0x4000, scoped, tag = 'input window, operand 0, single buffered']
    #allocation3 [shape = 's32[1]{0}', space=sflag, size = 0x4, scoped, tag = 'scoped memory for tpu_custom_call.1']
    #allocation4 [shape = 's32[1]{0}', space=sflag, size = 0x4, scoped, tag = 'scoped memory for tpu_custom_call.1']
    #allocation5 [shape = 'u8[98304]{0}', space=vmem, size = 0x18000, scoped, tag = 'input window, operand 1, single buffered']
    #allocation6 [shape = 's32[1]{0}', space=sflag, size = 0x4, scoped, tag = 'scoped memory for tpu_custom_call.1']
    #allocation7 [shape = 'u8[16384]{0}', space=vmem, size = 0x4000, scoped, tag = 'output window, operand 0, single buffered']
    %8 = vsyncpa [#allocation3], 0
    %9 = vsyncpa [#allocation6], 0
    %10 = vsyncpa [#allocation4], 0
    // Predicated region
    $region2: #{tpu_custom_call.1} parent=1 // pred_check
      _
    $region3: #{tpu_custom_call.1} parent=1 // pred_check_branch
      %12 = sbr.rel (0) target = $region5
    $region4: #{tpu_custom_call.1} parent=1 // pred_region
      %14 = vsyncadd [#allocation3], 0
      %s15 = sshll.u32 %s0, 4
      %s16 = int_to_ptr.hbm [resolvable:$true] %s15
      %s17 = sshll.u32 [#allocation2], 4
      %s18 = int_to_ptr.vmem [resolvable:$true] %s17
      %23 = dma.hbm_to_vmem [thread:$0]  %s16, 512, %s18, [#allocation3], 128, 128, 8
    $region5: #{tpu_custom_call.1} parent=1 // pred_fallthru
      _
    // Predicated region
    $region6: #{tpu_custom_call.1} parent=1 // pred_check
      _
    $region7: #{tpu_custom_call.1} parent=1 // pred_check_branch
      %25 = sbr.rel (0) target = $region9
    $region8: #{tpu_custom_call.1} parent=1 // pred_region
      %27 = vsyncadd [#allocation6], 0
      %s28 = sshll.u32 %s1, 4
      %s29 = int_to_ptr.hbm [resolvable:$true] %s28
      %s30 = sshll.u32 [#allocation5], 4
      %s31 = int_to_ptr.vmem [resolvable:$true] %s30
      %36 = dma.hbm_to_vmem [thread:$0]  %s29, 3072, %s31, [#allocation6], 64, 64, 4
    $region9: #{tpu_custom_call.1} parent=1 // pred_fallthru
      _
    // Predicated region
    $region10: #{tpu_custom_call.1} parent=1 // pred_check
      _
    $region11: #{tpu_custom_call.1} parent=1 // pred_check_branch
      %38 = sbr.rel (0) target = $region13
    $region12: #{tpu_custom_call.1} parent=1 // pred_region
      _
    $region13: #{tpu_custom_call.1} parent=1 // pred_fallthru
      _
    // Predicated region
    $region14: #{tpu_custom_call.1} parent=1 // pred_check
      _
    $region15: #{tpu_custom_call.1} parent=1 // pred_check_branch
      %40 = sbr.rel (0) target = $region17
    $region16: #{tpu_custom_call.1} parent=1 // pred_region
      %42 = dma.done [#allocation3], 512
    $region17: #{tpu_custom_call.1} parent=1 // pred_fallthru
      _
    // Predicated region
    $region18: #{tpu_custom_call.1} parent=1 // pred_check
      _
    $region19: #{tpu_custom_call.1} parent=1 // pred_check_branch
      %44 = sbr.rel (0) target = $region21
    $region20: #{tpu_custom_call.1} parent=1 // pred_region
      %46 = dma.done [#allocation6], 3072
    $region21: #{tpu_custom_call.1} parent=1 // pred_fallthru
      _
    %v47 = vld [vmem:[#allocation2] sm:$0xff]
    %v48 = vld [vmem:[#allocation2 + $0x8] sm:$0xff]
    %v49 = vld [vmem:[#allocation2 + $0x10] sm:$0xff]
    %v50 = vld [vmem:[#allocation2 + $0x18] sm:$0xff]
    %v51 = vlaneseq
    %v52 = vshrl.u32 %v51, 7
    %v53 = vadd.s32 %v52, 8
    %v54 = vadd.s32 %v52, 16
    %v55 = vadd.s32 %v52, 24
    %vm56 = vcmp.lt.s32.totalorder %v52, 0
    %v57 = vsub.s32 0, %v52
    %v58 = vsel %vm56, %v57, %v52
    %v59 = vshrl.u32 %v58, 4
    %v60 = vand.u32 %v58, 15
    %v61 = vsub.s32 0, %v60
    %v62 = vsel %vm56, %v61, %v60
    %vm63 = vcmp.lt.s32.totalorder %v53, 0
    %v64 = vsub.s32 0, %v53
    %v65 = vsel %vm63, %v64, %v53
    %v66 = vshrl.u32 %v65, 4
    %v67 = vand.u32 %v65, 15
    %v68 = vsub.s32 0, %v67
    %v69 = vsel %vm63, %v68, %v67
    %vm70 = vcmp.lt.s32.totalorder %v54, 0
    %v71 = vsub.s32 0, %v54
    %v72 = vsel %vm70, %v71, %v54
    %v73 = vshrl.u32 %v72, 4
    %v74 = vand.u32 %v72, 15
    %v75 = vsub.s32 0, %v74
    %v76 = vsel %vm70, %v75, %v74
    %vm77 = vcmp.lt.s32.totalorder %v55, 0
    %v78 = vsub.s32 0, %v55
    %v79 = vsel %vm77, %v78, %v55
    %v80 = vshrl.u32 %v79, 4
    %v81 = vand.u32 %v79, 15
    %v82 = vsub.s32 0, %v81
    %v83 = vsel %vm77, %v82, %v81
    %vm84 = vcmp.ne.s32.totalorder %v62, 0
    %vm85 = vcmp.ne.s32.totalorder %v69, 0
    %vm86 = vcmp.ne.s32.totalorder %v76, 0
    %vm87 = vcmp.ne.s32.totalorder %v83, 0
    %vm88 = vcmp.lt.s32.totalorder %v62, 0
    %vm89 = vcmp.lt.s32.totalorder %v69, 0
    %vm90 = vcmp.lt.s32.totalorder %v76, 0
    %vm91 = vcmp.lt.s32.totalorder %v83, 0
    %vm92 = vmand %vm88, %vm84
    %vm93 = vmand %vm89, %vm85
    %vm94 = vmand %vm90, %vm86
    %vm95 = vmand %vm91, %vm87
    %v96 = vadd.s32 %v62, 16
    %v97 = vadd.s32 %v69, 16
    %v98 = vadd.s32 %v76, 16
    %v99 = vadd.s32 %v83, 16
    %v100 = vsel %vm92, %v96, %v62
    %v101 = vsel %vm93, %v97, %v69
    %v102 = vsel %vm94, %v98, %v76
    %v103 = vsel %vm95, %v99, %v83
    %vm104 = vcmp.eq.s32.totalorder %v100, 0
    %vm105 = vcmp.eq.s32.totalorder %v101, 0
    %vm106 = vcmp.eq.s32.totalorder %v102, 0
    %vm107 = vcmp.eq.s32.totalorder %v103, 0
    %v108 = vrot.slane %v47, 7
    %v109 = vrot.slane %v48, 7
    %v110 = vrot.slane %v49, 7
    %v111 = vrot.slane %v50, 7
    %vm112 = vcmp.lt.s32.totalorder %v52, 1
    %v113 = vsel %vm112, %v110, %v111
    %v114 = vsel %vm112, %v109, %v110
    %v115 = vsel %vm112, %v108, %v109
    %v116 = vsel %vm112, %v111, %v108
    %v117 = vsel %vm104, 1, 0
    %v118 = vsel %vm105, 1, 0
    %v119 = vsel %vm106, 1, 0
    %v120 = vsel %vm107, 1, 0
    %vm121 = vcmp.eq.s32.totalorder %v117, 1
    %vm122 = vcmp.eq.s32.totalorder %v118, 1
    %vm123 = vcmp.eq.s32.totalorder %v119, 1
    %vm124 = vcmp.eq.s32.totalorder %v120, 1
    %v125 = vsel %vm121, 0.0, %v116
    %v126 = vsel %vm122, 0.0, %v115
    %v127 = vsel %vm123, 0.0, %v114
    %v128 = vsel %vm124, 0.0, %v113
    %vm129 = vcmp.eq.s32.totalorder %v100, 15
    %vm130 = vcmp.eq.s32.totalorder %v101, 15
    %vm131 = vcmp.eq.s32.totalorder %v102, 15
    %vm132 = vcmp.eq.s32.totalorder %v103, 15
    %v133 = vrot.slane %v47, 1
    %v134 = vrot.slane %v48, 1
    %v135 = vrot.slane %v49, 1
    %v136 = vrot.slane %v50, 1
    %vm137 = vcmp.lt.s32.totalorder %v52, 7
    %v138 = vsel %vm137, %v135, %v136
    %v139 = vsel %vm137, %v134, %v135
    %v140 = vsel %vm137, %v133, %v134
    %v141 = vsel %vm137, %v136, %v133
    %v142 = vsel %vm129, 1, 0
    %v143 = vsel %vm130, 1, 0
    %v144 = vsel %vm131, 1, 0
    %v145 = vsel %vm132, 1, 0
    %vm146 = vcmp.eq.s32.totalorder %v142, 1
    %vm147 = vcmp.eq.s32.totalorder %v143, 1
    %vm148 = vcmp.eq.s32.totalorder %v144, 1
    %vm149 = vcmp.eq.s32.totalorder %v145, 1
    %v150 = vsel %vm146, 0.0, %v140
    %v151 = vsel %vm147, 0.0, %v139
    %v152 = vsel %vm148, 0.0, %v138
    %v153 = vsel %vm149, 0.0, %v141
    %v154 = vpack.c.bf16 %v126, %v125
    %v155 = vpack.c.bf16 %v48, %v47
    %v156 = vpack.c.bf16 %v151, %v150
    %v157 = vpack.c.bf16 %v128, %v127
    %v158 = vpack.c.bf16 %v50, %v49
    %v159 = vpack.c.bf16 %v153, %v152
    %v160 = vld [vmem:[#allocation5] sm:$0xf]
    %v161 = vld [vmem:[#allocation5 + $0x4] sm:$0xf]
    %v162 = vld [vmem:[#allocation5 + $0x8] sm:$0xf]
    %v163 = vld [vmem:[#allocation5 + $0xc] sm:$0xf]
    %v164 = vld [vmem:[#allocation5 + $0x10] sm:$0xf]
    %v165 = vld [vmem:[#allocation5 + $0x14] sm:$0xf]
    %v166 = vld [vmem:[#allocation5 + $0x18] sm:$0xf]
    %v167 = vld [vmem:[#allocation5 + $0x1c] sm:$0xf]
    %v168 = vld [vmem:[#allocation5 + $0x20] sm:$0xf]
    %v169 = vld [vmem:[#allocation5 + $0x24] sm:$0xf]
    %v170 = vld [vmem:[#allocation5 + $0x28] sm:$0xf]
    %v171 = vld [vmem:[#allocation5 + $0x2c] sm:$0xf]
    %v172 = vld [vmem:[#allocation5 + $0x30] sm:$0xf]
    %v173 = vld [vmem:[#allocation5 + $0x34] sm:$0xf]
    %v174 = vld [vmem:[#allocation5 + $0x38] sm:$0xf]
    %v175 = vld [vmem:[#allocation5 + $0x3c] sm:$0xf]
    %v176 = vld [vmem:[#allocation5 + $0x40] sm:$0xf]
    %v177 = vld [vmem:[#allocation5 + $0x44] sm:$0xf]
    %v178 = vld [vmem:[#allocation5 + $0x48] sm:$0xf]
    %v179 = vld [vmem:[#allocation5 + $0x4c] sm:$0xf]
    %v180 = vld [vmem:[#allocation5 + $0x50] sm:$0xf]
    %v181 = vld [vmem:[#allocation5 + $0x54] sm:$0xf]
    %v182 = vld [vmem:[#allocation5 + $0x58] sm:$0xf]
    %v183 = vld [vmem:[#allocation5 + $0x5c] sm:$0xf]
    %v184 = vld [vmem:[#allocation5 + $0x60] sm:$0xf]
    %v185 = vld [vmem:[#allocation5 + $0x64] sm:$0xf]
    %v186 = vld [vmem:[#allocation5 + $0x68] sm:$0xf]
    %v187 = vld [vmem:[#allocation5 + $0x6c] sm:$0xf]
    %v188 = vld [vmem:[#allocation5 + $0x70] sm:$0xf]
    %v189 = vld [vmem:[#allocation5 + $0x74] sm:$0xf]
    %v190 = vld [vmem:[#allocation5 + $0x78] sm:$0xf]
    %v191 = vld [vmem:[#allocation5 + $0x7c] sm:$0xf]
    %v192 = vld [vmem:[#allocation5 + $0x80] sm:$0xf]
    %v193 = vld [vmem:[#allocation5 + $0x84] sm:$0xf]
    %v194 = vld [vmem:[#allocation5 + $0x88] sm:$0xf]
    %v195 = vld [vmem:[#allocation5 + $0x8c] sm:$0xf]
    %v196 = vld [vmem:[#allocation5 + $0x90] sm:$0xf]
    %v197 = vld [vmem:[#allocation5 + $0x94] sm:$0xf]
    %v198 = vld [vmem:[#allocation5 + $0x98] sm:$0xf]
    %v199 = vld [vmem:[#allocation5 + $0x9c] sm:$0xf]
    %v200 = vld [vmem:[#allocation5 + $0xa0] sm:$0xf]
    %v201 = vld [vmem:[#allocation5 + $0xa4] sm:$0xf]
    %v202 = vld [vmem:[#allocation5 + $0xa8] sm:$0xf]
    %v203 = vld [vmem:[#allocation5 + $0xac] sm:$0xf]
    %v204 = vld [vmem:[#allocation5 + $0xb0] sm:$0xf]
    %v205 = vld [vmem:[#allocation5 + $0xb4] sm:$0xf]
    %v206 = vld [vmem:[#allocation5 + $0xb8] sm:$0xf]
    %v207 = vld [vmem:[#allocation5 + $0xbc] sm:$0xf]
    %v208 = vld [vmem:[%s2] sm:$0x1]
    %v210 = vperm.slane %v208, 0
    %v260 = vunpack.c.l.b16 %v160
    %v261 = vunpack.c.l.b16 %v161
    %v262 = vunpack.c.l.b16 %v162
    %v263 = vunpack.c.l.b16 %v163
    %v264 = vunpack.c.l.b16 %v164
    %v265 = vunpack.c.l.b16 %v165
    %v266 = vunpack.c.l.b16 %v166
    %v267 = vunpack.c.l.b16 %v167
    %v268 = vunpack.c.l.b16 %v168
    %v269 = vunpack.c.l.b16 %v169
    %v270 = vunpack.c.l.b16 %v170
    %v271 = vunpack.c.l.b16 %v171
    %v272 = vunpack.c.l.b16 %v172
    %v273 = vunpack.c.l.b16 %v173
    %v274 = vunpack.c.l.b16 %v174
    %v275 = vunpack.c.l.b16 %v175
    %v276 = vunpack.c.l.b16 %v176
    %v277 = vunpack.c.l.b16 %v177
    %v278 = vunpack.c.l.b16 %v178
    %v279 = vunpack.c.l.b16 %v179
    %v280 = vunpack.c.l.b16 %v180
    %v281 = vunpack.c.l.b16 %v181
    %v282 = vunpack.c.l.b16 %v182
    %v283 = vunpack.c.l.b16 %v183
    %v284 = vunpack.c.l.b16 %v184
    %v285 = vunpack.c.l.b16 %v185
    %v286 = vunpack.c.l.b16 %v186
    %v287 = vunpack.c.l.b16 %v187
    %v288 = vunpack.c.l.b16 %v188
    %v289 = vunpack.c.l.b16 %v189
    %v290 = vunpack.c.l.b16 %v190
    %v291 = vunpack.c.l.b16 %v191
    %v292 = vunpack.c.l.b16 %v192
    %v293 = vunpack.c.l.b16 %v193
    %v294 = vunpack.c.l.b16 %v194
    %v295 = vunpack.c.l.b16 %v195
    %v296 = vunpack.c.l.b16 %v196
    %v297 = vunpack.c.l.b16 %v197
    %v298 = vunpack.c.l.b16 %v198
    %v299 = vunpack.c.l.b16 %v199
    %v300 = vunpack.c.l.b16 %v200
    %v301 = vunpack.c.l.b16 %v201
    %v302 = vunpack.c.l.b16 %v202
    %v303 = vunpack.c.l.b16 %v203
    %v304 = vunpack.c.l.b16 %v204
    %v305 = vunpack.c.l.b16 %v205
    %v306 = vunpack.c.l.b16 %v206
    %v307 = vunpack.c.l.b16 %v207
    %v308 = vpack.c.b16 %v261, %v260
    %v309 = vpack.c.b16 %v263, %v262
    %v310 = vpack.c.b16 %v265, %v264
    %v311 = vpack.c.b16 %v267, %v266
    %v312 = vpack.c.b16 %v269, %v268
    %v313 = vpack.c.b16 %v271, %v270
    %v314 = vpack.c.b16 %v273, %v272
    %v315 = vpack.c.b16 %v275, %v274
    %v316 = vpack.c.b16 %v277, %v276
    %v317 = vpack.c.b16 %v279, %v278
    %v318 = vpack.c.b16 %v281, %v280
    %v319 = vpack.c.b16 %v283, %v282
    %v320 = vpack.c.b16 %v285, %v284
    %v321 = vpack.c.b16 %v287, %v286
    %v322 = vpack.c.b16 %v289, %v288
    %v323 = vpack.c.b16 %v291, %v290
    %v324 = vpack.c.b16 %v293, %v292
    %v325 = vpack.c.b16 %v295, %v294
    %v326 = vpack.c.b16 %v297, %v296
    %v327 = vpack.c.b16 %v299, %v298
    %v328 = vpack.c.b16 %v301, %v300
    %v329 = vpack.c.b16 %v303, %v302
    %v330 = vpack.c.b16 %v305, %v304
    %v331 = vpack.c.b16 %v307, %v306
    %356 = vmatpush.bf16.msra.mxu0 %v315
    %357 = vmatpush.bf16.msra.mxu0 %v314
    %358 = vmatpush.bf16.msra.mxu0 %v313
    %359 = vmatpush.bf16.msra.mxu0 %v312
    %360 = vmatpush.bf16.msra.mxu0 %v311
    %361 = vmatpush.bf16.msra.mxu0 %v310
    %362 = vmatpush.bf16.msra.mxu0 %v309
    %363 = vmatpush.bf16.msra.mxu0 %v308
    %364 = vmatmul.bf16.gmra.mxu0 %v154
    %v365 = vpop.f32.mrf.mxu0
    %v366 = vadd.f32 %v210, %v365
    %v367 = vpop.f32.mrf.mxu0
    %v368 = vadd.f32 %v210, %v367
    %369 = vmatmul.bf16.gmra.mxu0 %v157
    %v370 = vpop.f32.mrf.mxu0
    %v371 = vadd.f32 %v210, %v370
    %v372 = vpop.f32.mrf.mxu0
    %v373 = vadd.f32 %v210, %v372
    %374 = vdwg.mxu0
    %375 = vmatpush.bf16.msra.mxu0 %v323
    %376 = vmatpush.bf16.msra.mxu0 %v322
    %377 = vmatpush.bf16.msra.mxu0 %v321
    %378 = vmatpush.bf16.msra.mxu0 %v320
    %379 = vmatpush.bf16.msra.mxu0 %v319
    %380 = vmatpush.bf16.msra.mxu0 %v318
    %381 = vmatpush.bf16.msra.mxu0 %v317
    %382 = vmatpush.bf16.msra.mxu0 %v316
    %383 = vmatmul.bf16.gmra.mxu0 %v155
    %v384 = vpop.f32.mrf.mxu0
    %v385 = vadd.f32 %v366, %v384
    %v386 = vpop.f32.mrf.mxu0
    %v387 = vadd.f32 %v368, %v386
    %388 = vmatmul.bf16.gmra.mxu0 %v158
    %v389 = vpop.f32.mrf.mxu0
    %v390 = vadd.f32 %v371, %v389
    %v391 = vpop.f32.mrf.mxu0
    %v392 = vadd.f32 %v373, %v391
    %393 = vdwg.mxu0
    %394 = vmatpush.bf16.msra.mxu0 %v331
    %395 = vmatpush.bf16.msra.mxu0 %v330
    %396 = vmatpush.bf16.msra.mxu0 %v329
    %397 = vmatpush.bf16.msra.mxu0 %v328
    %398 = vmatpush.bf16.msra.mxu0 %v327
    %399 = vmatpush.bf16.msra.mxu0 %v326
    %400 = vmatpush.bf16.msra.mxu0 %v325
    %401 = vmatpush.bf16.msra.mxu0 %v324
    %402 = vmatmul.bf16.gmra.mxu0 %v156
    %v403 = vpop.f32.mrf.mxu0
    %v404 = vadd.f32 %v385, %v403
    %v405 = vpop.f32.mrf.mxu0
    %v406 = vadd.f32 %v387, %v405
    %407 = vmatmul.bf16.gmra.mxu0 %v159
    %v408 = vpop.f32.mrf.mxu0
    %v409 = vadd.f32 %v390, %v408
    %v410 = vpop.f32.mrf.mxu0
    %v411 = vadd.f32 %v392, %v410
    %412 = vdwg.mxu0
    %v413 = vadd.f32 %v404, %v47
    %v414 = vadd.f32 %v406, %v48
    %v415 = vadd.f32 %v409, %v49
    %v416 = vadd.f32 %v411, %v50
    %417 = vst [vmem:[#allocation7] sm:$0xff] %v413
    %418 = vst [vmem:[#allocation7 + $0x8] sm:$0xff] %v414
    %419 = vst [vmem:[#allocation7 + $0x10] sm:$0xff] %v415
    %420 = vst [vmem:[#allocation7 + $0x18] sm:$0xff] %v416
    // Predicated region
    $region22: #{tpu_custom_call.1} parent=1 // pred_check
      _
    $region23: #{tpu_custom_call.1} parent=1 // pred_check_branch
      %422 = sbr.rel (0) target = $region25
    $region24: #{tpu_custom_call.1} parent=1 // pred_region
      %424 = vsyncadd [#allocation4], 0
      %s425 = sshll.u32 [#allocation7], 4
      %s426 = int_to_ptr.vmem [resolvable:$true] %s425
      %s427 = sshll.u32 %s3, 4
      %s428 = int_to_ptr.hbm [resolvable:$true] %s427
      %433 = dma.vmem_to_hbm [thread:$0]  %s426, 512, %s428, [#allocation4], 128, 128, 8
    $region25: #{tpu_custom_call.1} parent=1 // pred_fallthru
      _
    // Predicated region
    $region26: #{tpu_custom_call.1} parent=1 // pred_check
      _
    $region27: #{tpu_custom_call.1} parent=1 // pred_check_branch
      %435 = sbr.rel (0) target = $region29
    $region28: #{tpu_custom_call.1} parent=1 // pred_region
      %437 = dma.done [#allocation4], 512
    $region29: #{tpu_custom_call.1} parent=1 // pred_fallthru
      _
    %438 = vsyncpa [#allocation3], 1
    %439 = vsyncpa [#allocation6], 1
    %440 = vsyncpa [#allocation4], 1

</llo_original>
